<compile_context>
chip_gen: v7x
topology: tpu7x:2x2x1
jax: 0.10.0
libtpu: 0.0.40
codegen_flags: <defaults>
</compile_context>

<pallas_src>
import functools

import jax
import jax.numpy as jnp
from jax.experimental import pallas as pl
from jax.experimental.pallas import tpu as pltpu


def _round_up(x, m):
    return ((x + m - 1) // m) * m


def _latent_dynamics_kernel(z_ref, a_ref, w1z_ref, w1a_ref, b1_ref,
                            w2_ref, b2_ref, o_ref):
    """Fused MLP tile: out = relu(z@W1z + a@W1a + b1) @ W2 + b2."""
    h = jnp.dot(z_ref[...], w1z_ref[...], preferred_element_type=jnp.float32)
    h = h + jnp.dot(a_ref[...], w1a_ref[...], preferred_element_type=jnp.float32)
    h = h + b1_ref[...]                         # broadcast (1, H), f32 VPU
    h = jnp.maximum(h, 0.0)                     # ReLU in f32
    out = jnp.dot(h.astype(w2_ref.dtype), w2_ref[...],
                  preferred_element_type=jnp.float32)
    out = out + b2_ref[...]                     # broadcast (1, D_out_pad)
    o_ref[...] = out.astype(o_ref.dtype)


def prepare_params(params, latent_dim, lane=128):
    """Split w1 into z/a panels and zero-pad w2/b2 to a lane-dense output width.

    params: (w1 (D_in,H), b1 (H,), w2 (H,D_out), b2 (D_out,)) PyTorch-style.
    Returns kernel-ready params (done once, outside the hot path).
    """
    w1, b1, w2, b2 = params
    d_in, hidden = w1.shape
    d_out = w2.shape[1]
    assert d_out == latent_dim
    action_dim = d_in - latent_dim

    w1_z = w1[:latent_dim, :]                   # (latent, H)
    w1_a = w1[latent_dim:, :]                   # (action, H)
    b1r = b1.reshape(1, hidden)

    d_out_pad = _round_up(d_out, lane)
    w2_p = jnp.zeros((hidden, d_out_pad), w2.dtype).at[:, :d_out].set(w2)
    b2_p = jnp.zeros((1, d_out_pad), b2.dtype).at[:, :d_out].set(
        b2.reshape(1, d_out))
    return (w1_z, w1_a, b1r, w2_p, b2_p)


@functools.partial(jax.jit, static_argnames=("max_tb",))
def latent_dynamics_forward(z, a, kernel_params, *, max_tb=256):
    """z: (B, latent_dim), a: (B, action_dim) -> (B, latent_dim)."""
    w1_z, w1_a, b1, w2_p, b2_p = kernel_params
    B, latent = z.shape
    action = a.shape[1]
    H = w1_z.shape[1]
    D_out_pad = w2_p.shape[1]

    # Batch tile: multiple of 8 sublanes, up to max_tb rows per grid step.
    tb = min(max_tb, _round_up(B, 8))
    B_pad = _round_up(B, tb)
    if B_pad != B:
        z = jnp.pad(z, ((0, B_pad - B), (0, 0)))
        a = jnp.pad(a, ((0, B_pad - B), (0, 0)))
    grid = (B_pad // tb,)

    itemsize = jnp.dtype(z.dtype).itemsize
    weight_bytes = sum(int(p.size) * jnp.dtype(p.dtype).itemsize
                       for p in kernel_params)
    cost = pl.CostEstimate(
        flops=2 * B_pad * H * (latent + action + D_out_pad),
        transcendentals=0,
        bytes_accessed=(B_pad * (latent + action + D_out_pad) * itemsize
                        + weight_bytes),
    )

    out = pl.pallas_call(
        _latent_dynamics_kernel,
        out_shape=jax.ShapeDtypeStruct((B_pad, D_out_pad), z.dtype),
        grid_spec=pltpu.PrefetchScalarGridSpec(
            num_scalar_prefetch=0,
            grid=grid,
            in_specs=[
                # Activations: tiled along batch.
                pl.BlockSpec((tb, latent), lambda i: (i, 0)),
                pl.BlockSpec((tb, action), lambda i: (i, 0)),
                # Weights: same block for every grid step -> VMEM-resident.
                pl.BlockSpec((latent, H), lambda i: (0, 0)),
                pl.BlockSpec((action, H), lambda i: (0, 0)),
                pl.BlockSpec((1, H), lambda i: (0, 0)),
                pl.BlockSpec((H, D_out_pad), lambda i: (0, 0)),
                pl.BlockSpec((1, D_out_pad), lambda i: (0, 0)),
            ],
            out_specs=pl.BlockSpec((tb, D_out_pad), lambda i: (i, 0)),
        ),
        compiler_params=pltpu.CompilerParams(
            dimension_semantics=("parallel",)),   # megacore sharding on v7x
        cost_estimate=cost,
    )(z, a, w1_z, w1_a, b1, w2_p, b2_p)

    # Slice away batch and lane padding back to the module's output shape.
    return out[:B, :latent]


def init_params(key, latent_dim, action_dim, hidden=256, dtype=jnp.float32):
    """PyTorch-style params, nn.Linear default init U[-1/sqrt(fan_in), +]."""
    d_in = latent_dim + action_dim
    k1, k2, k3, k4 = jax.random.split(key, 4)
    lim1 = 1.0 / jnp.sqrt(d_in)
    lim2 = 1.0 / jnp.sqrt(hidden)
    w1 = jax.random.uniform(k1, (d_in, hidden), dtype, -lim1, lim1)
    b1 = jax.random.uniform(k2, (hidden,), dtype, -lim1, lim1)
    w2 = jax.random.uniform(k3, (hidden, latent_dim), dtype, -lim2, lim2)
    b2 = jax.random.uniform(k4, (latent_dim,), dtype, -lim2, lim2)
    return (w1, b1, w2, b2)


if __name__ == "__main__":
    latent_dim = 32
    action_dim = 8
    batch = 2

    key = jax.random.PRNGKey(0)
    kz, ka, kp = jax.random.split(key, 3)
    z = jax.random.normal(kz, (batch, latent_dim), jnp.float32)
    a = jax.random.normal(ka, (batch, action_dim), jnp.float32)

    params = init_params(kp, latent_dim, action_dim)          # PyTorch layout
    kparams = prepare_params(params, latent_dim)               # kernel layout

    out = latent_dynamics_forward(z, a, kparams)
    out = jax.block_until_ready(out)

    # Reference in plain JAX (identical math to the PyTorch module).
    w1, b1, w2, b2 = params
    x = jnp.concatenate([z, a], axis=-1)
    ref = jnp.maximum(x @ w1 + b1, 0.0) @ w2 + b2
    assert out.shape == (batch, latent_dim)
    assert jnp.allclose(out, ref, atol=1e-5, rtol=1e-5)

    print("KERNEL_OK")
</pallas_src>

<mosaic_0001>
module attributes {stable_mosaic.version = 11 : i64} {
  func.func @_latent_dynamics_kernel(%arg0: i32, %arg1: memref<8x32xf32, #tpu.memory_space<vmem>>, %arg2: memref<8x8xf32, #tpu.memory_space<vmem>>, %arg3: memref<32x256xf32, #tpu.memory_space<vmem>>, %arg4: memref<8x256xf32, #tpu.memory_space<vmem>>, %arg5: memref<1x256xf32, #tpu.memory_space<vmem>>, %arg6: memref<256x128xf32, #tpu.memory_space<vmem>>, %arg7: memref<1x128xf32, #tpu.memory_space<vmem>>, %arg8: memref<8x128xf32, #tpu.memory_space<vmem>>) attributes {dimension_semantics = [#tpu.dimension_semantics<parallel>], iteration_bounds = array<i64: 1>, scalar_prefetch = 0 : i64, scratch_operands = 0 : i64, tpu.core_type = #tpu.core_type<tc>, window_params = [{transform_indices = @transform_0, window_bounds = array<i64: 8, 32>}, {transform_indices = @transform_1, window_bounds = array<i64: 8, 8>}, {pipeline_mode = #tpu.pipeline_mode<synchronous>, transform_indices = @transform_2, window_bounds = array<i64: 32, 256>}, {pipeline_mode = #tpu.pipeline_mode<synchronous>, transform_indices = @transform_3, window_bounds = array<i64: 8, 256>}, {pipeline_mode = #tpu.pipeline_mode<synchronous>, transform_indices = @transform_4, window_bounds = array<i64: 1, 256>}, {pipeline_mode = #tpu.pipeline_mode<synchronous>, transform_indices = @transform_5, window_bounds = array<i64: 256, 128>}, {pipeline_mode = #tpu.pipeline_mode<synchronous>, transform_indices = @transform_6, window_bounds = array<i64: 1, 128>}, {transform_indices = @transform_7, window_bounds = array<i64: 8, 128>}]} {
    %c0 = arith.constant 0 : index
    %c0_0 = arith.constant 0 : index
    %0 = vector.load %arg1[%c0, %c0_0] : memref<8x32xf32, #tpu.memory_space<vmem>>, vector<8x32xf32>
    %c0_1 = arith.constant 0 : index
    %c0_2 = arith.constant 0 : index
    %1 = vector.load %arg3[%c0_1, %c0_2] : memref<32x256xf32, #tpu.memory_space<vmem>>, vector<32x256xf32>
    %cst = arith.constant dense<0.000000e+00> : vector<8x256xf32>
    %2 = tpu.matmul %0, %1, %cst {dimension_numbers = #tpu.dot_dimension_numbers<[1], [0], [0], [1], [0, 0, 1, 1], [], []>} : vector<8x32xf32>, vector<32x256xf32>, vector<8x256xf32> -> vector<8x256xf32>
    %c0_3 = arith.constant 0 : index
    %c0_4 = arith.constant 0 : index
    %3 = vector.load %arg2[%c0_3, %c0_4] : memref<8x8xf32, #tpu.memory_space<vmem>>, vector<8x8xf32>
    %c0_5 = arith.constant 0 : index
    %c0_6 = arith.constant 0 : index
    %4 = vector.load %arg4[%c0_5, %c0_6] : memref<8x256xf32, #tpu.memory_space<vmem>>, vector<8x256xf32>
    %cst_7 = arith.constant dense<0.000000e+00> : vector<8x256xf32>
    %5 = tpu.matmul %3, %4, %cst_7 {dimension_numbers = #tpu.dot_dimension_numbers<[1], [0], [0], [1], [0, 0, 1, 1], [], []>} : vector<8x8xf32>, vector<8x256xf32>, vector<8x256xf32> -> vector<8x256xf32>
    %6 = arith.addf %2, %5 : vector<8x256xf32>
    %c0_8 = arith.constant 0 : index
    %c0_9 = arith.constant 0 : index
    %7 = vector.load %arg5[%c0_8, %c0_9] : memref<1x256xf32, #tpu.memory_space<vmem>>, vector<1x256xf32>
    %8 = vector.broadcast %7 : vector<1x256xf32> to vector<8x256xf32>
    %9 = arith.addf %6, %8 : vector<8x256xf32>
    %cst_10 = arith.constant 0.000000e+00 : f32
    %10 = vector.broadcast %cst_10 : f32 to vector<8x256xf32>
    %11 = arith.maximumf %9, %10 : vector<8x256xf32>
    %c0_11 = arith.constant 0 : index
    %c0_12 = arith.constant 0 : index
    %12 = vector.load %arg6[%c0_11, %c0_12] : memref<256x128xf32, #tpu.memory_space<vmem>>, vector<256x128xf32>
    %cst_13 = arith.constant dense<0.000000e+00> : vector<8x128xf32>
    %13 = tpu.matmul %11, %12, %cst_13 {dimension_numbers = #tpu.dot_dimension_numbers<[1], [0], [0], [1], [0, 0, 1, 1], [], []>} : vector<8x256xf32>, vector<256x128xf32>, vector<8x128xf32> -> vector<8x128xf32>
    %c0_14 = arith.constant 0 : index
    %c0_15 = arith.constant 0 : index
    %14 = vector.load %arg7[%c0_14, %c0_15] : memref<1x128xf32, #tpu.memory_space<vmem>>, vector<1x128xf32>
    %15 = vector.broadcast %14 : vector<1x128xf32> to vector<8x128xf32>
    %16 = arith.addf %13, %15 : vector<8x128xf32>
    %c0_16 = arith.constant 0 : index
    %c0_17 = arith.constant 0 : index
    %17 = vector.load %arg8[%c0_16, %c0_17] : memref<8x128xf32, #tpu.memory_space<vmem>>, vector<8x128xf32>
    tpu.vector_store %arg8[%c0_16, %c0_17], %16 {strides = array<i32>} : memref<8x128xf32, #tpu.memory_space<vmem>>, vector<8x128xf32>,
    return
  }
  func.func @transform_0(%arg0: i32) -> (i32, i32) {
    %c0_i32 = arith.constant 0 : i32
    %c0_i32_0 = arith.constant 0 : i32
    return %arg0, %c0_i32 : i32, i32
  }
  func.func @transform_1(%arg0: i32) -> (i32, i32) {
    %c0_i32 = arith.constant 0 : i32
    %c0_i32_0 = arith.constant 0 : i32
    return %arg0, %c0_i32 : i32, i32
  }
  func.func @transform_2(%arg0: i32) -> (i32, i32) {
    %c0_i32 = arith.constant 0 : i32
    %c0_i32_0 = arith.constant 0 : i32
    %c0_i32_1 = arith.constant 0 : i32
    return %c0_i32, %c0_i32_0 : i32, i32
  }
  func.func @transform_3(%arg0: i32) -> (i32, i32) {
    %c0_i32 = arith.constant 0 : i32
    %c0_i32_0 = arith.constant 0 : i32
    %c0_i32_1 = arith.constant 0 : i32
    return %c0_i32, %c0_i32_0 : i32, i32
  }
  func.func @transform_4(%arg0: i32) -> (i32, i32) {
    %c0_i32 = arith.constant 0 : i32
    %c0_i32_0 = arith.constant 0 : i32
    %c0_i32_1 = arith.constant 0 : i32
    return %c0_i32, %c0_i32_0 : i32, i32
  }
  func.func @transform_5(%arg0: i32) -> (i32, i32) {
    %c0_i32 = arith.constant 0 : i32
    %c0_i32_0 = arith.constant 0 : i32
    %c0_i32_1 = arith.constant 0 : i32
    return %c0_i32, %c0_i32_0 : i32, i32
  }
  func.func @transform_6(%arg0: i32) -> (i32, i32) {
    %c0_i32 = arith.constant 0 : i32
    %c0_i32_0 = arith.constant 0 : i32
    %c0_i32_1 = arith.constant 0 : i32
    return %c0_i32, %c0_i32_0 : i32, i32
  }
  func.func @transform_7(%arg0: i32) -> (i32, i32) {
    %c0_i32 = arith.constant 0 : i32
    %c0_i32_0 = arith.constant 0 : i32
    return %arg0, %c0_i32 : i32, i32
  }
}

</mosaic_0001>

<llo_original>
// kernel: latent_dynamics_forward.1
$region0: #{latent_dynamics_forward.1}
  #allocation0 [shape = 'u32[]', space=smem, size = 0x4, offset = 0x4, fixed_abs, tag = 'smem constant byte address 0x4 - core index']
  #allocation1 [shape = 'u32[144,128]{1,0:T(1,128)}', space=vmem, size = 0x12000, scoped, tag = 'internal scratch']
  %s0 = inlined_call_operand.vmem [shape: f32[8,32], index: 0, kind: input, shape index: {}]
  %s1 = inlined_call_operand.vmem [shape: f32[8,8], index: 1, kind: input, shape index: {}]
  %s2 = inlined_call_operand.hbm [shape: f32[32,256], index: 2, kind: input, shape index: {}]
  %s3 = inlined_call_operand.vmem [shape: f32[8,256], index: 3, kind: input, shape index: {}]
  %s4 = inlined_call_operand.vmem [shape: f32[1,256], index: 4, kind: input, shape index: {}]
  %s5 = inlined_call_operand.hbm [shape: f32[256,128], index: 5, kind: input, shape index: {}]
  %s6 = inlined_call_operand.vmem [shape: f32[1,128], index: 6, kind: input, shape index: {}]
  %s7 = inlined_call_operand.vmem [shape: f32[8,128], index: 7, kind: output, shape index: {}]
  %s8 = sld [smem:[#allocation0]]
  $region46: #{latent_dynamics_forward.1} parent=0
    _
  %s10 = ssub.s32 1, %s8
  %s11 = scalar_select 0, %s10, %s8
  $region1: #{latent_dynamics_forward.1} parent=0
    #allocation2 [shape = 'u8[32768]{0}', space=vmem, size = 0x8000, scoped, tag = 'input window, operand 2, single buffered']
    #allocation3 [shape = 's32[1]{0}', space=sflag, size = 0x4, scoped, tag = 'scoped memory for latent_dynamics_forward.1']
    #allocation4 [shape = 'u8[131072]{0}', space=vmem, size = 0x20000, scoped, tag = 'input window, operand 5, single buffered']
    #allocation5 [shape = 's32[1]{0}', space=sflag, size = 0x4, scoped, tag = 'scoped memory for latent_dynamics_forward.1']
    %12 = vsyncpa [#allocation3], 0
    %13 = vsyncpa [#allocation5], 0
    // Predicated region
    $region2: #{latent_dynamics_forward.1} parent=1 // pred_check
      _
    $region3: #{latent_dynamics_forward.1} parent=1 // pred_check_branch
      %15 = sbr.rel (0) target = $region5
    $region4: #{latent_dynamics_forward.1} parent=1 // pred_region
      _
    $region5: #{latent_dynamics_forward.1} parent=1 // pred_fallthru
      _
    // Predicated region
    $region6: #{latent_dynamics_forward.1} parent=1 // pred_check
      _
    $region7: #{latent_dynamics_forward.1} parent=1 // pred_check_branch
      %17 = sbr.rel (0) target = $region9
    $region8: #{latent_dynamics_forward.1} parent=1 // pred_region
      _
    $region9: #{latent_dynamics_forward.1} parent=1 // pred_fallthru
      _
    // Predicated region
    $region10: #{latent_dynamics_forward.1} parent=1 // pred_check
      _
    $region11: #{latent_dynamics_forward.1} parent=1 // pred_check_branch
      %19 = sbr.rel (0) target = $region13
    $region12: #{latent_dynamics_forward.1} parent=1 // pred_region
      %s21 = ssub.s32 1024, 1024
      %22 = vsyncadd [#allocation3], %s21
      %s23 = sshll.u32 [#allocation2], 4
      %s24 = int_to_ptr.vmem [resolvable:$true] %s23
      %29 = dma.hbm_to_vmem [thread:$0]  %s2, 1024, %s24, [#allocation3], 256, 256, 16
    $region13: #{latent_dynamics_forward.1} parent=1 // pred_fallthru
      _
    // Predicated region
    $region14: #{latent_dynamics_forward.1} parent=1 // pred_check
      _
    $region15: #{latent_dynamics_forward.1} parent=1 // pred_check_branch
      %31 = sbr.rel (0) target = $region17
    $region16: #{latent_dynamics_forward.1} parent=1 // pred_region
      _
    $region17: #{latent_dynamics_forward.1} parent=1 // pred_fallthru
      _
    // Predicated region
    $region18: #{latent_dynamics_forward.1} parent=1 // pred_check
      _
    $region19: #{latent_dynamics_forward.1} parent=1 // pred_check_branch
      %33 = sbr.rel (0) target = $region21
    $region20: #{latent_dynamics_forward.1} parent=1 // pred_region
      _
    $region21: #{latent_dynamics_forward.1} parent=1 // pred_fallthru
      _
    // Predicated region
    $region22: #{latent_dynamics_forward.1} parent=1 // pred_check
      _
    $region23: #{latent_dynamics_forward.1} parent=1 // pred_check_branch
      %35 = sbr.rel (0) target = $region25
    $region24: #{latent_dynamics_forward.1} parent=1 // pred_region
      %s37 = ssub.s32 4096, 4096
      %38 = vsyncadd [#allocation5], %s37
      %s39 = sshll.u32 [#allocation4], 4
      %s40 = int_to_ptr.vmem [resolvable:$true] %s39
      %45 = dma.hbm_to_vmem [thread:$0]  %s5, 4096, %s40, [#allocation5], 128, 128, 8
    $region25: #{latent_dynamics_forward.1} parent=1 // pred_fallthru
      _
    // Predicated region
    $region26: #{latent_dynamics_forward.1} parent=1 // pred_check
      _
    $region27: #{latent_dynamics_forward.1} parent=1 // pred_check_branch
      %47 = sbr.rel (0) target = $region29
    $region28: #{latent_dynamics_forward.1} parent=1 // pred_region
      _
    $region29: #{latent_dynamics_forward.1} parent=1 // pred_fallthru
      _
    // Predicated region
    $region30: #{latent_dynamics_forward.1} parent=1 // pred_check
      _
    $region31: #{latent_dynamics_forward.1} parent=1 // pred_check_branch
      %49 = sbr.rel (0) target = $region33
    $region32: #{latent_dynamics_forward.1} parent=1 // pred_region
      %50 = dma.done [#allocation3], 1024
    $region33: #{latent_dynamics_forward.1} parent=1 // pred_fallthru
      _
    // Predicated region
    $region34: #{latent_dynamics_forward.1} parent=1 // pred_check
      _
    $region35: #{latent_dynamics_forward.1} parent=1 // pred_check_branch
      %52 = sbr.rel (0) target = $region37
    $region36: #{latent_dynamics_forward.1} parent=1 // pred_region
      %53 = dma.done [#allocation5], 4096
    $region37: #{latent_dynamics_forward.1} parent=1 // pred_fallthru
      _
    %v54 = vld [vmem:[%s0] sm:$0xff]
    %v55 = vld [vmem:[#allocation2] sm:$0xff]
    %v56 = vld [vmem:[#allocation2 + $0x8] sm:$0xff]
    %v57 = vld [vmem:[#allocation2 + $0x10] sm:$0xff]
    %v58 = vld [vmem:[#allocation2 + $0x18] sm:$0xff]
    %v59 = vld [vmem:[#allocation2 + $0x20] sm:$0xff]
    %v60 = vld [vmem:[#allocation2 + $0x28] sm:$0xff]
    %v61 = vld [vmem:[#allocation2 + $0x30] sm:$0xff]
    %v62 = vld [vmem:[#allocation2 + $0x38] sm:$0xff]
    %v63 = vld [vmem:[%s1] sm:$0xff]
    %v64 = vld [vmem:[%s3] sm:$0xff]
    %v65 = vld [vmem:[%s3 + $0x8] sm:$0xff]
    %vm66 = vcmask 64512
    %v68 = vsel %vm66, %v63, 0
    %70 = vmatprep.subr.mxu0 %v65
    %71 = vmatpush1.msra.mxu0 %v64
    %72 = vmatprep.subr.mxu0 0.0
    %73 = vmatpush1.msra.mxu0 0.0
    %74 = vmatprep.subr.mxu0 0.0
    %75 = vmatpush1.msra.mxu0 0.0
    %76 = vmatprep.subr.mxu0 0.0
    %77 = vmatpush1.msra.mxu0 0.0
    %78 = vmatprep.subr.mxu0 0.0
    %79 = vmatpush1.msra.mxu0 0.0
    %80 = vmatprep.subr.mxu0 0.0
    %81 = vmatpush1.msra.mxu0 0.0
    %82 = vmatprep.subr.mxu0 0.0
    %83 = vmatpush1.msra.mxu0 0.0
    %84 = vmatprep.subr.mxu0 0.0
    %85 = vmatpush1.msra.mxu0 0.0
    %86 = vmatprep.subr.mxu0 0.0
    %87 = vmatpush1.msra.mxu0 0.0
    %88 = vmatprep.subr.mxu0 0.0
    %89 = vmatpush1.msra.mxu0 0.0
    %90 = vmatprep.subr.mxu0 0.0
    %91 = vmatpush1.msra.mxu0 0.0
    %92 = vmatprep.subr.mxu0 0.0
    %93 = vmatpush1.msra.mxu0 0.0
    %94 = vmatprep.subr.mxu0 0.0
    %95 = vmatpush1.msra.mxu0 0.0
    %96 = vmatprep.subr.mxu0 0.0
    %97 = vmatpush1.msra.mxu0 0.0
    %98 = vmatprep.subr.mxu0 0.0
    %99 = vmatpush1.msra.mxu0 0.0
    %100 = vmatprep.subr.mxu0 0.0
    %101 = vmatpush1.msra.mxu0 0.0
    %102 = vmatprep.subr.mxu0 0.0
    %103 = vmatpush1.msra.mxu0 0.0
    %104 = vmatprep.subr.mxu0 0.0
    %105 = vmatpush1.msra.mxu0 0.0
    %106 = vmatprep.subr.mxu0 0.0
    %107 = vmatpush1.msra.mxu0 0.0
    %108 = vmatprep.subr.mxu0 0.0
    %109 = vmatpush1.msra.mxu0 0.0
    %110 = vmatprep.subr.mxu0 0.0
    %111 = vmatpush1.msra.mxu0 0.0
    %112 = vmatprep.subr.mxu0 0.0
    %113 = vmatpush1.msra.mxu0 0.0
    %114 = vmatprep.subr.mxu0 0.0
    %115 = vmatpush1.msra.mxu0 0.0
    %116 = vmatprep.subr.mxu0 0.0
    %117 = vmatpush1.msra.mxu0 0.0
    %118 = vmatprep.subr.mxu0 0.0
    %119 = vmatpush1.msra.mxu0 0.0
    %120 = vmatprep.subr.mxu0 0.0
    %121 = vmatpush1.msra.mxu0 0.0
    %122 = vmatprep.subr.mxu0 0.0
    %123 = vmatpush1.msra.mxu0 0.0
    %124 = vmatprep.subr.mxu0 0.0
    %125 = vmatpush1.msra.mxu0 0.0
    %126 = vmatprep.subr.mxu0 0.0
    %127 = vmatpush1.msra.mxu0 0.0
    %128 = vmatprep.subr.mxu0 0.0
    %129 = vmatpush1.msra.mxu0 0.0
    %130 = vmatprep.subr.mxu0 0.0
    %131 = vmatpush1.msra.mxu0 0.0
    %132 = vmatprep.subr.mxu0 0.0
    %133 = vmatpush1.msra.mxu0 0.0
    %134 = vmatprep.mubr.f32.mxu0 0.0
    %135 = vmatmul.mubr.f32.gmra.mrb[0].mxu0 %v68
    %v136 = vpop.f32.mrb[0].mxu0
    %v137 = vadd.f32 0.0, %v136
    %v138 = vpop.f32.mrb[0].mxu0
    %v139 = vadd.f32 0.0, %v138
    %140 = vdwg.mxu0
    %vm141 = vcmask 261120
    %v143 = vsel %vm141, %v54, 0
    %145 = vmatprep.subr.mxu0 %v56
    %146 = vmatpush1.msra.mxu0 %v55
    %147 = vmatprep.subr.mxu0 %v58
    %148 = vmatpush1.msra.mxu0 %v57
    %149 = vmatprep.subr.mxu0 %v60
    %150 = vmatpush1.msra.mxu0 %v59
    %151 = vmatprep.subr.mxu0 %v62
    %152 = vmatpush1.msra.mxu0 %v61
    %153 = vmatprep.subr.mxu0 0.0
    %154 = vmatpush1.msra.mxu0 0.0
    %155 = vmatprep.subr.mxu0 0.0
    %156 = vmatpush1.msra.mxu0 0.0
    %157 = vmatprep.subr.mxu0 0.0
    %158 = vmatpush1.msra.mxu0 0.0
    %159 = vmatprep.subr.mxu0 0.0
    %160 = vmatpush1.msra.mxu0 0.0
    %161 = vmatprep.subr.mxu0 0.0
    %162 = vmatpush1.msra.mxu0 0.0
    %163 = vmatprep.subr.mxu0 0.0
    %164 = vmatpush1.msra.mxu0 0.0
    %165 = vmatprep.subr.mxu0 0.0
    %166 = vmatpush1.msra.mxu0 0.0
    %167 = vmatprep.subr.mxu0 0.0
    %168 = vmatpush1.msra.mxu0 0.0
    %169 = vmatprep.subr.mxu0 0.0
    %170 = vmatpush1.msra.mxu0 0.0
    %171 = vmatprep.subr.mxu0 0.0
    %172 = vmatpush1.msra.mxu0 0.0
    %173 = vmatprep.subr.mxu0 0.0
    %174 = vmatpush1.msra.mxu0 0.0
    %175 = vmatprep.subr.mxu0 0.0
    %176 = vmatpush1.msra.mxu0 0.0
    %177 = vmatprep.subr.mxu0 0.0
    %178 = vmatpush1.msra.mxu0 0.0
    %179 = vmatprep.subr.mxu0 0.0
    %180 = vmatpush1.msra.mxu0 0.0
    %181 = vmatprep.subr.mxu0 0.0
    %182 = vmatpush1.msra.mxu0 0.0
    %183 = vmatprep.subr.mxu0 0.0
    %184 = vmatpush1.msra.mxu0 0.0
    %185 = vmatprep.subr.mxu0 0.0
    %186 = vmatpush1.msra.mxu0 0.0
    %187 = vmatprep.subr.mxu0 0.0
    %188 = vmatpush1.msra.mxu0 0.0
    %189 = vmatprep.subr.mxu0 0.0
    %190 = vmatpush1.msra.mxu0 0.0
    %191 = vmatprep.subr.mxu0 0.0
    %192 = vmatpush1.msra.mxu0 0.0
    %193 = vmatprep.subr.mxu0 0.0
    %194 = vmatpush1.msra.mxu0 0.0
    %195 = vmatprep.subr.mxu0 0.0
    %196 = vmatpush1.msra.mxu0 0.0
    %197 = vmatprep.subr.mxu0 0.0
    %198 = vmatpush1.msra.mxu0 0.0
    %199 = vmatprep.subr.mxu0 0.0
    %200 = vmatpush1.msra.mxu0 0.0
    %201 = vmatprep.subr.mxu0 0.0
    %202 = vmatpush1.msra.mxu0 0.0
    %203 = vmatprep.subr.mxu0 0.0
    %204 = vmatpush1.msra.mxu0 0.0
    %205 = vmatprep.subr.mxu0 0.0
    %206 = vmatpush1.msra.mxu0 0.0
    %207 = vmatprep.subr.mxu0 0.0
    %208 = vmatpush1.msra.mxu0 0.0
    %209 = vmatprep.mubr.f32.mxu0 0.0
    %210 = vmatmul.mubr.f32.gmra.mrb[0].mxu0 %v143
    %v211 = vpop.f32.mrb[0].mxu0
    %v212 = vadd.f32 %v137, %v211
    %v213 = vpop.f32.mrb[0].mxu0
    %v214 = vadd.f32 %v139, %v213
    %215 = vdwg.mxu0
    %v216 = vld [vmem:[%s4] sm:$0x3]
    %v218 = vlaneseq
    %v219 = vshrl.u32 %v218, 7
    %v220 = vsub.s32 0, %v219
    %v221 = vrot.slane %v216, %v220
    %v222 = vlaneseq
    %v223 = vshrl.u32 %v222, 7
    %v224 = vsub.s32 1, %v223
    %v225 = vrot.slane %v216, %v224
    %v228 = vadd.f32 %v212, %v221
    %v229 = vadd.f32 %v214, %v225
    %v230 = vmax.f32 %v228, 0.0
    %v231 = vmax.f32 %v229, 0.0
    %v232 = vld [vmem:[#allocation4] sm:$0xff]
    %v233 = vld [vmem:[#allocation4 + $0x8] sm:$0xff]
    %v234 = vld [vmem:[#allocation4 + $0x10] sm:$0xff]
    %v235 = vld [vmem:[#allocation4 + $0x18] sm:$0xff]
    %v236 = vld [vmem:[#allocation4 + $0x20] sm:$0xff]
    %v237 = vld [vmem:[#allocation4 + $0x28] sm:$0xff]
    %v238 = vld [vmem:[#allocation4 + $0x30] sm:$0xff]
    %v239 = vld [vmem:[#allocation4 + $0x38] sm:$0xff]
    %v240 = vld [vmem:[#allocation4 + $0x40] sm:$0xff]
    %v241 = vld [vmem:[#allocation4 + $0x48] sm:$0xff]
    %v242 = vld [vmem:[#allocation4 + $0x50] sm:$0xff]
    %v243 = vld [vmem:[#allocation4 + $0x58] sm:$0xff]
    %v244 = vld [vmem:[#allocation4 + $0x60] sm:$0xff]
    %v245 = vld [vmem:[#allocation4 + $0x68] sm:$0xff]
    %v246 = vld [vmem:[#allocation4 + $0x70] sm:$0xff]
    %v247 = vld [vmem:[#allocation4 + $0x78] sm:$0xff]
    %v248 = vld [vmem:[#allocation4 + $0x80] sm:$0xff]
    %v249 = vld [vmem:[#allocation4 + $0x88] sm:$0xff]
    %v250 = vld [vmem:[#allocation4 + $0x90] sm:$0xff]
    %v251 = vld [vmem:[#allocation4 + $0x98] sm:$0xff]
    %v252 = vld [vmem:[#allocation4 + $0xa0] sm:$0xff]
    %v253 = vld [vmem:[#allocation4 + $0xa8] sm:$0xff]
    %v254 = vld [vmem:[#allocation4 + $0xb0] sm:$0xff]
    %v255 = vld [vmem:[#allocation4 + $0xb8] sm:$0xff]
    %v256 = vld [vmem:[#allocation4 + $0xc0] sm:$0xff]
    %v257 = vld [vmem:[#allocation4 + $0xc8] sm:$0xff]
    %v258 = vld [vmem:[#allocation4 + $0xd0] sm:$0xff]
    %v259 = vld [vmem:[#allocation4 + $0xd8] sm:$0xff]
    %v260 = vld [vmem:[#allocation4 + $0xe0] sm:$0xff]
    %v261 = vld [vmem:[#allocation4 + $0xe8] sm:$0xff]
    %v262 = vld [vmem:[#allocation4 + $0xf0] sm:$0xff]
    %v263 = vld [vmem:[#allocation4 + $0xf8] sm:$0xff]
    %v264 = vld [vmem:[%s6] sm:$0x1]
    %v266 = vlaneseq
    %v267 = vshrl.u32 %v266, 7
    %v268 = vsub.s32 0, %v267
    %v269 = vrot.slane %v264, %v268
    %271 = vmatprep.subr.mxu0 0.0
    %272 = vmatpush1.msra.mxu0 %v232
    %273 = vmatprep.subr.mxu0 0.0
    %274 = vmatpush1.msra.mxu0 %v233
    %275 = vmatprep.subr.mxu0 0.0
    %276 = vmatpush1.msra.mxu0 %v234
    %277 = vmatprep.subr.mxu0 0.0
    %278 = vmatpush1.msra.mxu0 %v235
    %279 = vmatprep.subr.mxu0 0.0
    %280 = vmatpush1.msra.mxu0 %v236
    %281 = vmatprep.subr.mxu0 0.0
    %282 = vmatpush1.msra.mxu0 %v237
    %283 = vmatprep.subr.mxu0 0.0
    %284 = vmatpush1.msra.mxu0 %v238
    %285 = vmatprep.subr.mxu0 0.0
    %286 = vmatpush1.msra.mxu0 %v239
    %287 = vmatprep.subr.mxu0 0.0
    %288 = vmatpush1.msra.mxu0 %v240
    %289 = vmatprep.subr.mxu0 0.0
    %290 = vmatpush1.msra.mxu0 %v241
    %291 = vmatprep.subr.mxu0 0.0
    %292 = vmatpush1.msra.mxu0 %v242
    %293 = vmatprep.subr.mxu0 0.0
    %294 = vmatpush1.msra.mxu0 %v243
    %295 = vmatprep.subr.mxu0 0.0
    %296 = vmatpush1.msra.mxu0 %v244
    %297 = vmatprep.subr.mxu0 0.0
    %298 = vmatpush1.msra.mxu0 %v245
    %299 = vmatprep.subr.mxu0 0.0
    %300 = vmatpush1.msra.mxu0 %v246
    %301 = vmatprep.subr.mxu0 0.0
    %302 = vmatpush1.msra.mxu0 %v247
    %303 = vmatprep.subr.mxu0 0.0
    %304 = vmatpush1.msra.mxu0 %v248
    %305 = vmatprep.subr.mxu0 0.0
    %306 = vmatpush1.msra.mxu0 %v249
    %307 = vmatprep.subr.mxu0 0.0
    %308 = vmatpush1.msra.mxu0 %v250
    %309 = vmatprep.subr.mxu0 0.0
    %310 = vmatpush1.msra.mxu0 %v251
    %311 = vmatprep.subr.mxu0 0.0
    %312 = vmatpush1.msra.mxu0 %v252
    %313 = vmatprep.subr.mxu0 0.0
    %314 = vmatpush1.msra.mxu0 %v253
    %315 = vmatprep.subr.mxu0 0.0
    %316 = vmatpush1.msra.mxu0 %v254
    %317 = vmatprep.subr.mxu0 0.0
    %318 = vmatpush1.msra.mxu0 %v255
    %319 = vmatprep.subr.mxu0 0.0
    %320 = vmatpush1.msra.mxu0 %v256
    %321 = vmatprep.subr.mxu0 0.0
    %322 = vmatpush1.msra.mxu0 %v257
    %323 = vmatprep.subr.mxu0 0.0
    %324 = vmatpush1.msra.mxu0 %v258
    %325 = vmatprep.subr.mxu0 0.0
    %326 = vmatpush1.msra.mxu0 %v259
    %327 = vmatprep.subr.mxu0 0.0
    %328 = vmatpush1.msra.mxu0 %v260
    %329 = vmatprep.subr.mxu0 0.0
    %330 = vmatpush1.msra.mxu0 %v261
    %331 = vmatprep.subr.mxu0 0.0
    %332 = vmatpush1.msra.mxu0 %v262
    %333 = vmatprep.subr.mxu0 0.0
    %334 = vmatpush1.msra.mxu0 %v263
    %335 = vmatprep.mubr.f32.mxu0 %v231
    %336 = vmatmul.mubr.f32.gmra.mrb[0].mxu0 %v230
    %v337 = vpop.f32.mrb[0].mxu0
    %v338 = vadd.f32 %v269, %v337
    %v339 = vpop.f32.mrb[0].mxu0
    %340 = vdwg.mxu0
    %341 = vst [vmem:[%s7] sm:$0xff] %v338
    // Predicated region
    $region38: #{latent_dynamics_forward.1} parent=1 // pred_check
      _
    $region39: #{latent_dynamics_forward.1} parent=1 // pred_check_branch
      %343 = sbr.rel (0) target = $region41
    $region40: #{latent_dynamics_forward.1} parent=1 // pred_region
      _
    $region41: #{latent_dynamics_forward.1} parent=1 // pred_fallthru
      _
    // Predicated region
    $region42: #{latent_dynamics_forward.1} parent=1 // pred_check
      _
    $region43: #{latent_dynamics_forward.1} parent=1 // pred_check_branch
      %345 = sbr.rel (0) target = $region45
    $region44: #{latent_dynamics_forward.1} parent=1 // pred_region
      _
    $region45: #{latent_dynamics_forward.1} parent=1 // pred_fallthru
      _
    %346 = vsyncpa [#allocation3], 1
    %347 = vsyncpa [#allocation5], 1

</llo_original>
